<compile_context>
chip_gen: v5e
topology: v5e:2x2
jax: 0.10.0
libtpu: 0.0.40
codegen_flags: <defaults>
</compile_context>

<pallas_src>
import functools

import jax
import jax.numpy as jnp
from jax import lax
from jax.experimental import pallas as pl
from jax.experimental.pallas import tpu as pltpu


def _round_up(v, m):
    return -(-v // m) * m


def _conv_relu_block(x_ref, wk_ref, bc_ref, *, K, Lout, stride):
    """Conv1d + bias + ReLU for one batch -> (Lout, Cout_pad) f32 (channels-last)."""
    # x_ref: (1, Cin_pad, L_pad) f32. One small, tile-aligned transpose per step.
    xt = x_ref[0].T                                     # (L_pad, Cin_pad) f32
    span = (Lout - 1) * stride + 1
    acc = None
    for k in range(K):                                  # in-kernel im2col: K shifted sublane views
        xk = lax.slice_in_dim(xt, k, k + span, stride=stride, axis=0)        # (Lout, Cin_pad)
        pk = jnp.dot(xk.astype(jnp.bfloat16), wk_ref[k],
                     preferred_element_type=jnp.float32)                     # (Lout, Cout_pad)
        acc = pk if acc is None else acc + pk
    return jnp.maximum(acc + bc_ref[...], 0.0)


def _bn_stats_kernel(x_ref, wk_ref, bc_ref, sum_ref, sq_ref, *, K, Lout, stride):
    """Pass 1: accumulate per-channel sum and sum-of-squares of relu(conv)."""
    conv = _conv_relu_block(x_ref, wk_ref, bc_ref, K=K, Lout=Lout, stride=stride)

    @pl.when(pl.program_id(0) == 0)
    def _():
        sum_ref[...] = jnp.zeros_like(sum_ref)
        sq_ref[...] = jnp.zeros_like(sq_ref)

    sum_ref[...] += jnp.sum(conv, axis=0, keepdims=True)
    sq_ref[...] += jnp.sum(conv * conv, axis=0, keepdims=True)


def _eeg_main_kernel(x_ref, wk_ref, bc_ref, sum_ref, sq_ref, w1_ref, b1_ref,
                     w2_ref, b2_ref, out_ref, *, K, Lout, stride, Lpool,
                     pool_size, pool_stride, use_batchnorm, eps, bn_count):
    """Pass 2: conv+ReLU (recomputed), BN normalize, MaxPool, FC1, FC2 for one batch."""
    conv = _conv_relu_block(x_ref, wk_ref, bc_ref, K=K, Lout=Lout, stride=stride)

    if use_batchnorm:
        inv_n = 1.0 / float(bn_count)
        mean = sum_ref[...] * inv_n                                          # (1, Cout_pad)
        var = jnp.maximum(sq_ref[...] * inv_n - mean * mean, 0.0)            # biased
        conv = (conv - mean) * lax.rsqrt(var + eps)

    # MaxPool1d: max over pool_size shifted, strided sublane views (no reshape).
    span_p = (Lpool - 1) * pool_stride + 1
    pooled = None
    for p in range(pool_size):
        v = lax.slice_in_dim(conv, p, p + span_p, stride=pool_stride, axis=0)
        pooled = v if pooled is None else jnp.maximum(pooled, v)             # (Lpool, Cout_pad)

    # FC1: contract over (Lpool, Cout) as Lpool small MXU matmuls (no lane flatten).
    fc1 = None
    for j in range(Lpool):
        pj = lax.slice_in_dim(pooled, j, j + 1, axis=0).astype(jnp.bfloat16)  # (1, Cout_pad)
        t = jnp.dot(pj, w1_ref[j], preferred_element_type=jnp.float32)        # (1, H1_pad)
        fc1 = t if fc1 is None else fc1 + t
    fc1 = fc1 + b1_ref[...]

    fc2 = jnp.dot(fc1.astype(jnp.bfloat16), w2_ref[...],
                  preferred_element_type=jnp.float32) + b2_ref[...]           # (1, NC_pad)
    out_ref[0] = fc2


def eeg_cnn_forward(x, params, cfg):
    B, Cin, L = x.shape
    stride, pad, K = cfg["cnn_stride"], cfg["cnn_pad"], cfg["k"]
    Cout = cfg["out_channels"]
    Lout = (L + 2 * pad - (K - 1) - 1) // stride + 1
    ps, pstr = cfg["pool_size"], cfg["pool_stride"]
    Lpool = (Lout - (ps - 1) - 1) // pstr + 1
    H1 = Lpool
    NC = cfg["num_classes"]

    LANE, SUB = 128, 8
    Cout_p = _round_up(Cout, LANE)
    H1_p = _round_up(H1, LANE)
    NC_p = _round_up(NC, LANE)
    Cin_p = _round_up(Cin, SUB)
    L_pad = _round_up(L + 2 * pad, LANE)

    # ---------------- glue: zero-padding / packing of weights ----------------
    x_in = jnp.pad(x.astype(jnp.float32),
                   ((0, 0), (0, Cin_p - Cin), (pad, L_pad - L - pad)))        # (B, Cin_p, L_pad)

    wk = jnp.transpose(params["Wc"], (2, 1, 0))                               # (K, Cin, Cout)
    wk = jnp.pad(wk, ((0, 0), (0, Cin_p - Cin),
                      (0, Cout_p - Cout))).astype(jnp.bfloat16)               # (K, Cin_p, Cout_p)

    bc = params["bc"] if cfg.get("use_bias", True) else jnp.zeros((Cout,), jnp.float32)
    bc = jnp.pad(bc.astype(jnp.float32), (0, Cout_p - Cout)).reshape(1, Cout_p)

    # W1 is (H1, Cout*Lpool) in PyTorch flatten order c*Lpool + j; repack to
    # (Lpool, Cout_p, H1_p) so FC1 is a sum of per-window (Cout, H1) matmuls.
    w1 = params["W1"].reshape(H1, Cout, Lpool).transpose(2, 1, 0)             # (Lpool, Cout, H1)
    w1 = jnp.pad(w1, ((0, 0), (0, Cout_p - Cout),
                      (0, H1_p - H1))).astype(jnp.bfloat16)
    b1 = jnp.pad(params["b1"].astype(jnp.float32), (0, H1_p - H1)).reshape(1, H1_p)

    w2 = jnp.pad(params["W2"].T.astype(jnp.float32),
                 ((0, H1_p - H1), (0, NC_p - NC))).astype(jnp.bfloat16)       # (H1_p, NC_p)
    b2 = jnp.pad(params["b2"].astype(jnp.float32), (0, NC_p - NC)).reshape(1, NC_p)

    # Raise the scoped VMEM limit within per-chip physical capacity (v5e/v6e
    # default is 16/32 MiB; ~48 MiB cap on v7x's 64 MiB).
    try:
        cap = int(pltpu.get_tpu_info().vmem_capacity_bytes)
        vmem_limit = min(96 * 1024 * 1024, (3 * cap) // 4)
    except Exception:
        vmem_limit = None

    x_spec = pl.BlockSpec((1, Cin_p, L_pad), lambda b: (b, 0, 0))
    wk_spec = pl.BlockSpec((K, Cin_p, Cout_p), lambda b: (0, 0, 0))
    vec_c = pl.BlockSpec((1, Cout_p), lambda b: (0, 0))

    # ---------------- pass 1: per-channel BatchNorm statistics ----------------
    if cfg["use_batchnorm"]:
        ch_sum, ch_sq = pl.pallas_call(
            functools.partial(_bn_stats_kernel, K=K, Lout=Lout, stride=stride),
            grid=(B,),
            in_specs=[x_spec, wk_spec, vec_c],
            out_specs=[vec_c, vec_c],
            out_shape=[jax.ShapeDtypeStruct((1, Cout_p), jnp.float32),
                       jax.ShapeDtypeStruct((1, Cout_p), jnp.float32)],
            compiler_params=pltpu.CompilerParams(
                dimension_semantics=("arbitrary",),
                vmem_limit_bytes=vmem_limit),
        )(x_in, wk, bc)
    else:
        ch_sum = jnp.zeros((1, Cout_p), jnp.float32)
        ch_sq = jnp.zeros((1, Cout_p), jnp.float32)

    # ---------------- pass 2: normalize + pool + FC1 + FC2 ----------------
    out = pl.pallas_call(
        functools.partial(_eeg_main_kernel, K=K, Lout=Lout, stride=stride,
                          Lpool=Lpool, pool_size=ps, pool_stride=pstr,
                          use_batchnorm=cfg["use_batchnorm"], eps=cfg["eps"],
                          bn_count=B * Lout),
        grid=(B,),
        in_specs=[x_spec, wk_spec, vec_c, vec_c, vec_c,
                  pl.BlockSpec((Lpool, Cout_p, H1_p), lambda b: (0, 0, 0)),
                  pl.BlockSpec((1, H1_p), lambda b: (0, 0)),
                  pl.BlockSpec((H1_p, NC_p), lambda b: (0, 0)),
                  pl.BlockSpec((1, NC_p), lambda b: (0, 0))],
        out_specs=pl.BlockSpec((1, 1, NC_p), lambda b: (b, 0, 0)),
        out_shape=jax.ShapeDtypeStruct((B, 1, NC_p), jnp.float32),
        compiler_params=pltpu.CompilerParams(
            dimension_semantics=("parallel",),   # batches decoupled -> megacore on v7x
            vmem_limit_bytes=vmem_limit),
    )(x_in, wk, bc, ch_sum, ch_sq, w1, b1, w2, b2)

    return out[:, 0, :NC]


def reference(x, params, cfg):
    """Plain-JAX (f32) reference mirroring the PyTorch forward pass."""
    B, Cin, L = x.shape
    s, pad, K = cfg["cnn_stride"], cfg["cnn_pad"], cfg["k"]
    Lout = (L + 2 * pad - (K - 1) - 1) // s + 1
    xp = jnp.pad(x, ((0, 0), (0, 0), (pad, pad)))
    span = (Lout - 1) * s + 1
    conv = sum(jnp.einsum("oc,bcl->bol", params["Wc"][:, :, k],
                          xp[:, :, k:k + span:s]) for k in range(K))
    if cfg.get("use_bias", True):
        conv = conv + params["bc"][None, :, None]
    conv = jnp.maximum(conv, 0.0)
    if cfg["use_batchnorm"]:
        mean = conv.mean(axis=(0, 2), keepdims=True)
        var = conv.var(axis=(0, 2), keepdims=True)          # biased (training-mode BN)
        conv = (conv - mean) * lax.rsqrt(var + cfg["eps"])
    ps, pstr = cfg["pool_size"], cfg["pool_stride"]
    Lpool = (Lout - (ps - 1) - 1) // pstr + 1
    pooled = jnp.stack([conv[:, :, j * pstr:j * pstr + ps].max(axis=2)
                        for j in range(Lpool)], axis=2)     # (B, Cout, Lpool)
    flat = pooled.reshape(B, -1)
    fc1 = flat @ params["W1"].T + params["b1"]
    return fc1 @ params["W2"].T + params["b2"]


if __name__ == "__main__":
    cfg = dict(out_channels=8, k=3, cnn_stride=1, cnn_pad=1, use_bias=True,
               pool_size=2, pool_stride=2, num_classes=3,
               use_batchnorm=True, eps=1e-5)
    B, Cin, L = 2, 4, 16
    Cout, K = cfg["out_channels"], cfg["k"]
    Lout = (L + 2 * cfg["cnn_pad"] - (K - 1) - 1) // cfg["cnn_stride"] + 1
    Lpool = (Lout - (cfg["pool_size"] - 1) - 1) // cfg["pool_stride"] + 1

    key = jax.random.PRNGKey(0)
    ks = jax.random.split(key, 7)
    xavier_std = (2.0 / (Cin * K + Cout * K)) ** 0.5        # xavier_normal_ for the conv
    params = {
        "Wc": xavier_std * jax.random.normal(ks[0], (Cout, Cin, K), jnp.float32),
        "bc": 0.1 * jax.random.normal(ks[1], (Cout,), jnp.float32),
        "W1": 0.1 * jax.random.normal(ks[2], (Lpool, Cout * Lpool), jnp.float32),
        "b1": 0.1 * jax.random.normal(ks[3], (Lpool,), jnp.float32),
        "W2": 0.1 * jax.random.normal(ks[4], (cfg["num_classes"], Lpool), jnp.float32),
        "b2": 0.1 * jax.random.normal(ks[5], (cfg["num_classes"],), jnp.float32),
    }
    x = jax.random.normal(ks[6], (B, Cin, L), jnp.float32)

    out = eeg_cnn_forward(x, params, cfg)
    jax.block_until_ready(out)

    ref = reference(x, params, cfg)
    assert out.shape == (B, cfg["num_classes"])
    # bf16 MXU operands with f32 accumulation -> relaxed tolerance vs. f32 reference.
    assert jnp.allclose(out, ref, atol=5e-2, rtol=5e-2), (out, ref)
    print("KERNEL_OK")
</pallas_src>

<mosaic_0001>
module attributes {stable_mosaic.version = 11 : i64} {
  func.func @_bn_stats_kernel(%arg0: i32, %arg1: memref<1x8x128xf32, #tpu.memory_space<vmem>>, %arg2: memref<3x8x128xbf16, #tpu.memory_space<vmem>>, %arg3: memref<1x128xf32, #tpu.memory_space<vmem>>, %arg4: memref<1x128xf32, #tpu.memory_space<vmem>>, %arg5: memref<1x128xf32, #tpu.memory_space<vmem>>) attributes {dimension_semantics = [#tpu.dimension_semantics<arbitrary>], iteration_bounds = array<i64: 2>, scalar_prefetch = 0 : i64, scratch_operands = 0 : i64, tpu.core_type = #tpu.core_type<tc>, window_params = [{transform_indices = @transform_0, window_bounds = array<i64: 1, 8, 128>}, {pipeline_mode = #tpu.pipeline_mode<synchronous>, transform_indices = @transform_1, window_bounds = array<i64: 3, 8, 128>}, {pipeline_mode = #tpu.pipeline_mode<synchronous>, transform_indices = @transform_2, window_bounds = array<i64: 1, 128>}, {pipeline_mode = #tpu.pipeline_mode<synchronous>, transform_indices = @transform_3, window_bounds = array<i64: 1, 128>}, {pipeline_mode = #tpu.pipeline_mode<synchronous>, transform_indices = @transform_4, window_bounds = array<i64: 1, 128>}]} {
    %c0 = arith.constant 0 : index
    %c0_0 = arith.constant 0 : index
    %c0_1 = arith.constant 0 : index
    %0 = vector.load %arg1[%c0, %c0_0, %c0_1] : memref<1x8x128xf32, #tpu.memory_space<vmem>>, vector<1x8x128xf32>
    %1 = vector.shape_cast %0 : vector<1x8x128xf32> to vector<8x128xf32>
    %2 = tpu.transpose %1, [1, 0] : vector<8x128xf32> -> vector<128x8xf32>
    %3 = vector.extract_strided_slice %2 {offsets = [0, 0], sizes = [16, 8], strides = [1, 1]} : vector<128x8xf32> to vector<16x8xf32>
    %4 = arith.truncf %3 : vector<16x8xf32> to vector<16x8xbf16>
    %c0_2 = arith.constant 0 : index
    %c0_3 = arith.constant 0 : index
    %c0_4 = arith.constant 0 : index
    %5 = vector.load %arg2[%c0_2, %c0_3, %c0_4] : memref<3x8x128xbf16, #tpu.memory_space<vmem>>, vector<1x8x128xbf16>
    %6 = vector.shape_cast %5 : vector<1x8x128xbf16> to vector<8x128xbf16>
    %cst = arith.constant dense<0.000000e+00> : vector<16x128xf32>
    %7 = tpu.matmul %4, %6, %cst {dimension_numbers = #tpu.dot_dimension_numbers<[1], [0], [0], [1], [0, 0, 1, 1], [], []>} : vector<16x8xbf16>, vector<8x128xbf16>, vector<16x128xf32> -> vector<16x128xf32>
    %8 = vector.extract_strided_slice %2 {offsets = [1, 0], sizes = [16, 8], strides = [1, 1]} : vector<128x8xf32> to vector<16x8xf32>
    %9 = arith.truncf %8 : vector<16x8xf32> to vector<16x8xbf16>
    %c1 = arith.constant 1 : index
    %c0_5 = arith.constant 0 : index
    %c0_6 = arith.constant 0 : index
    %10 = vector.load %arg2[%c1, %c0_5, %c0_6] : memref<3x8x128xbf16, #tpu.memory_space<vmem>>, vector<1x8x128xbf16>
    %11 = vector.shape_cast %10 : vector<1x8x128xbf16> to vector<8x128xbf16>
    %cst_7 = arith.constant dense<0.000000e+00> : vector<16x128xf32>
    %12 = tpu.matmul %9, %11, %cst_7 {dimension_numbers = #tpu.dot_dimension_numbers<[1], [0], [0], [1], [0, 0, 1, 1], [], []>} : vector<16x8xbf16>, vector<8x128xbf16>, vector<16x128xf32> -> vector<16x128xf32>
    %13 = arith.addf %7, %12 : vector<16x128xf32>
    %14 = vector.extract_strided_slice %2 {offsets = [2, 0], sizes = [16, 8], strides = [1, 1]} : vector<128x8xf32> to vector<16x8xf32>
    %15 = arith.truncf %14 : vector<16x8xf32> to vector<16x8xbf16>
    %c2 = arith.constant 2 : index
    %c0_8 = arith.constant 0 : index
    %c0_9 = arith.constant 0 : index
    %16 = vector.load %arg2[%c2, %c0_8, %c0_9] : memref<3x8x128xbf16, #tpu.memory_space<vmem>>, vector<1x8x128xbf16>
    %17 = vector.shape_cast %16 : vector<1x8x128xbf16> to vector<8x128xbf16>
    %cst_10 = arith.constant dense<0.000000e+00> : vector<16x128xf32>
    %18 = tpu.matmul %15, %17, %cst_10 {dimension_numbers = #tpu.dot_dimension_numbers<[1], [0], [0], [1], [0, 0, 1, 1], [], []>} : vector<16x8xbf16>, vector<8x128xbf16>, vector<16x128xf32> -> vector<16x128xf32>
    %19 = arith.addf %13, %18 : vector<16x128xf32>
    %c0_11 = arith.constant 0 : index
    %c0_12 = arith.constant 0 : index
    %20 = vector.load %arg3[%c0_11, %c0_12] : memref<1x128xf32, #tpu.memory_space<vmem>>, vector<1x128xf32>
    %21 = vector.broadcast %20 : vector<1x128xf32> to vector<16x128xf32>
    %22 = arith.addf %19, %21 : vector<16x128xf32>
    %cst_13 = arith.constant 0.000000e+00 : f32
    %23 = vector.broadcast %cst_13 : f32 to vector<16x128xf32>
    %24 = arith.maximumf %22, %23 : vector<16x128xf32>
    %c0_i32 = arith.constant 0 : i32
    %25 = arith.cmpi eq, %arg0, %c0_i32 : i32
    %26 = arith.extui %25 : i1 to i32
    %c0_i32_14 = arith.constant 0 : i32
    %27 = arith.cmpi ne, %26, %c0_i32_14 : i32
    scf.if %27 {
      %cst_25 = arith.constant 0.000000e+00 : f32
      %39 = vector.broadcast %cst_25 : f32 to vector<1x128xf32>
      %c0_26 = arith.constant 0 : index
      %c0_27 = arith.constant 0 : index
      %40 = vector.load %arg4[%c0_26, %c0_27] : memref<1x128xf32, #tpu.memory_space<vmem>>, vector<1x128xf32>
      tpu.vector_store %arg4[%c0_26, %c0_27], %39 {strides = array<i32>} : memref<1x128xf32, #tpu.memory_space<vmem>>, vector<1x128xf32>,
      %cst_28 = arith.constant 0.000000e+00 : f32
      %41 = vector.broadcast %cst_28 : f32 to vector<1x128xf32>
      %c0_29 = arith.constant 0 : index
      %c0_30 = arith.constant 0 : index
      %42 = vector.load %arg5[%c0_29, %c0_30] : memref<1x128xf32, #tpu.memory_space<vmem>>, vector<1x128xf32>
      tpu.vector_store %arg5[%c0_29, %c0_30], %41 {strides = array<i32>} : memref<1x128xf32, #tpu.memory_space<vmem>>, vector<1x128xf32>,
    } else {
    }
    %c0_15 = arith.constant 0 : index
    %c0_16 = arith.constant 0 : index
    %28 = vector.load %arg4[%c0_15, %c0_16] : memref<1x128xf32, #tpu.memory_space<vmem>>, vector<1x128xf32>
    %cst_17 = arith.constant dense<0.000000e+00> : vector<128xf32>
    %29 = vector.multi_reduction <add>, %24, %cst_17 [0] : vector<16x128xf32> to vector<128xf32>
    %30 = vector.shape_cast %29 : vector<128xf32> to vector<1x128xf32>
    %31 = arith.addf %28, %30 : vector<1x128xf32>
    %c0_18 = arith.constant 0 : index
    %c0_19 = arith.constant 0 : index
    %32 = vector.load %arg4[%c0_18, %c0_19] : memref<1x128xf32, #tpu.memory_space<vmem>>, vector<1x128xf32>
    tpu.vector_store %arg4[%c0_18, %c0_19], %31 {strides = array<i32>} : memref<1x128xf32, #tpu.memory_space<vmem>>, vector<1x128xf32>,
    %c0_20 = arith.constant 0 : index
    %c0_21 = arith.constant 0 : index
    %33 = vector.load %arg5[%c0_20, %c0_21] : memref<1x128xf32, #tpu.memory_space<vmem>>, vector<1x128xf32>
    %34 = arith.mulf %24, %24 : vector<16x128xf32>
    %cst_22 = arith.constant dense<0.000000e+00> : vector<128xf32>
    %35 = vector.multi_reduction <add>, %34, %cst_22 [0] : vector<16x128xf32> to vector<128xf32>
    %36 = vector.shape_cast %35 : vector<128xf32> to vector<1x128xf32>
    %37 = arith.addf %33, %36 : vector<1x128xf32>
    %c0_23 = arith.constant 0 : index
    %c0_24 = arith.constant 0 : index
    %38 = vector.load %arg5[%c0_23, %c0_24] : memref<1x128xf32, #tpu.memory_space<vmem>>, vector<1x128xf32>
    tpu.vector_store %arg5[%c0_23, %c0_24], %37 {strides = array<i32>} : memref<1x128xf32, #tpu.memory_space<vmem>>, vector<1x128xf32>,
    return
  }
  func.func @transform_0(%arg0: i32) -> (i32, i32, i32) {
    %c0_i32 = arith.constant 0 : i32
    %c0_i32_0 = arith.constant 0 : i32
    %c0_i32_1 = arith.constant 0 : i32
    return %arg0, %c0_i32, %c0_i32_0 : i32, i32, i32
  }
  func.func @transform_1(%arg0: i32) -> (i32, i32, i32) {
    %c0_i32 = arith.constant 0 : i32
    %c0_i32_0 = arith.constant 0 : i32
    %c0_i32_1 = arith.constant 0 : i32
    %c0_i32_2 = arith.constant 0 : i32
    return %c0_i32, %c0_i32_0, %c0_i32_1 : i32, i32, i32
  }
  func.func @transform_2(%arg0: i32) -> (i32, i32) {
    %c0_i32 = arith.constant 0 : i32
    %c0_i32_0 = arith.constant 0 : i32
    %c0_i32_1 = arith.constant 0 : i32
    return %c0_i32, %c0_i32_0 : i32, i32
  }
  func.func @transform_3(%arg0: i32) -> (i32, i32) {
    %c0_i32 = arith.constant 0 : i32
    %c0_i32_0 = arith.constant 0 : i32
    %c0_i32_1 = arith.constant 0 : i32
    return %c0_i32, %c0_i32_0 : i32, i32
  }
  func.func @transform_4(%arg0: i32) -> (i32, i32) {
    %c0_i32 = arith.constant 0 : i32
    %c0_i32_0 = arith.constant 0 : i32
    %c0_i32_1 = arith.constant 0 : i32
    return %c0_i32, %c0_i32_0 : i32, i32
  }
}

</mosaic_0001>

<llo_original>
// kernel: tpu_custom_call.1
$region0: #{tpu_custom_call.1}
  #allocation0 [shape = 'u32[]', space=smem, size = 0x4, offset = 0x4, fixed_abs, tag = 'smem constant byte address 0x4 - core index']
  #allocation1 [shape = 'u32[72,128]{1,0:T(1,128)}', space=vmem, size = 0x9000, scoped, tag = 'internal scratch']
  %s0 = inlined_call_operand.hbm [shape: f32[2,8,128], index: 0, kind: input, shape index: {}]
  %s1 = inlined_call_operand.hbm [shape: bf16[3,8,128], index: 1, kind: input, shape index: {}]
  %s2 = inlined_call_operand.vmem [shape: f32[1,128], index: 2, kind: input, shape index: {}]
  %s3 = inlined_call_operand.hbm [shape: f32[1,128], index: 3, kind: output, shape index: {0}]
  %s4 = inlined_call_operand.hbm [shape: f32[1,128], index: 4, kind: output, shape index: {1}]
  %5 = xla_tuple %s3, %s4
  %s6 = sld [smem:[#allocation0]]
  $region65: #{tpu_custom_call.1} parent=0
    _
  %s8 = ssub.s32 1, %s6
  %s9 = scalar_select 0, %s8, %s6
  $region1: #{tpu_custom_call.1} parent=0
    #allocation2 [shape = 'u8[8192]{0}', space=vmem, size = 0x2000, scoped, tag = 'input window, operand 0']
    #allocation3 [shape = 's32[2]{0}', space=sflag, size = 0x8, scoped, tag = 'scoped memory for tpu_custom_call.1']
    #allocation4 [shape = 's32[2]{0}', space=sflag, size = 0x8, scoped, tag = 'scoped memory for tpu_custom_call.1']
    #allocation5 [shape = 'u8[6144]{0}', space=vmem, size = 0x1800, scoped, tag = 'input window, operand 1, single buffered']
    #allocation6 [shape = 's32[1]{0}', space=sflag, size = 0x4, scoped, tag = 'scoped memory for tpu_custom_call.1']
    #allocation7 [shape = 'u8[512]{0}', space=vmem, size = 0x400, scoped, tag = 'output window, operand 0, single buffered']
    #allocation8 [shape = 'u8[512]{0}', space=vmem, size = 0x400, scoped, tag = 'output window, operand 1, single buffered']
    #allocation9 [shape = 's32[1]{0}', space=sflag, size = 0x4, scoped, tag = 'scoped memory for tpu_custom_call.1']
    %10 = vsyncpa [#allocation3], 0
    %s11 = scalar_lea.sflag [#allocation3], 1
    %12 = vsyncpa %s11, 0
    %13 = vsyncpa [#allocation6], 0
    %14 = vsyncpa [#allocation4], 0
    %15 = vsyncpa [#allocation9], 0
    loop: start=0, step=1, limit=4
    $region2: #{tpu_custom_call.1} parent=1 // loop_pre_header
      _
    $region3: #{tpu_custom_call.1} parent=1 // loop_header
      %s17 = sphi 0, %s21
      %p18 = scmp.ge.s32.totalorder %s17, 4
      %s27 = sphi 0, %s29
      %s30 = sphi 0, %s27
      %s31 = sphi 0, %s30
      %s47 = sphi 0, %s31
      %s51 = sphi 0, %s51
      %s53 = sphi 0, %s51
      %s54 = sphi 0, %s53
      %s68 = sphi 0, %s54
      %s72 = sphi 0, %s72
      %s74 = sphi 0, %s72
      %s75 = sphi 0, %s74
      %s89 = sphi 0, %s75
      %s93 = sphi 0, %s93
      %s95 = sphi 0, %s93
      %s96 = sphi 0, %s95
      %s110 = sphi 0, %s96
      %s114 = sphi 0, %s114
      %s116 = sphi 0, %s114
      %s117 = sphi 0, %s116
      %s131 = sphi 0, %s117
    $region4: #{tpu_custom_call.1} parent=1 // loop_header_branch
      %20 = sbr.rel (%p18) target = $region8
    $region5: #{tpu_custom_call.1} parent=1 // loop_body
      %s22 = ssub.s32 %s17, 1
      %s23 = ssub.s32 %s17, 2
      %s24 = sadd.s32 %s17, 1
      %s25 = ssub.s32 %s17, %s24
      %p26 = scmp.eq.s32.totalorder %s25, 0
      %s28 = sadd.s32 %s27, 1
      %s29 = scalar_select %p26, %s27, %s28
      %p32 = pneg %p26
      %p33 = scmp.eq.s32.totalorder %s17, 1
      %p34 = por %p32, %p33
      %p35 = scmp.ne.s32.totalorder %s27, %s30
      %p36 = scmp.eq.s32.totalorder %s17, 0
      %p37 = por %p35, %p36
      %p38 = scmp.ne.s32.totalorder %s27, %s30
      %p39 = scmp.eq.s32.totalorder %s22, 1
      %p40 = por %p38, %p39
      %p41 = scmp.ne.s32.totalorder %s30, %s31
      %p42 = scmp.eq.s32.totalorder %s22, 0
      %p43 = por %p41, %p42
      %p44 = scmp.ne.s32.totalorder %s30, %s31
      %p45 = scmp.eq.s32.totalorder %s23, 1
      %p46 = por %p44, %p45
      %p48 = scmp.ne.s32.totalorder %s31, %s47
      %p49 = scmp.eq.s32.totalorder %s23, 0
      %p50 = por %p48, %p49
      %s52 = sadd.s32 %s51, 1
      %p55 = scmp.eq.s32.totalorder %s17, 1
      %p56 = scmp.ne.s32.totalorder %s51, %s53
      %p57 = scmp.eq.s32.totalorder %s17, 0
      %p58 = por %p56, %p57
      %p59 = scmp.ne.s32.totalorder %s51, %s53
      %p60 = scmp.eq.s32.totalorder %s22, 1
      %p61 = por %p59, %p60
      %p62 = scmp.ne.s32.totalorder %s53, %s54
      %p63 = scmp.eq.s32.totalorder %s22, 0
      %p64 = por %p62, %p63
      %p65 = scmp.ne.s32.totalorder %s53, %s54
      %p66 = scmp.eq.s32.totalorder %s23, 1
      %p67 = por %p65, %p66
      %p69 = scmp.ne.s32.totalorder %s54, %s68
      %p70 = scmp.eq.s32.totalorder %s23, 0
      %p71 = por %p69, %p70
      %s73 = sadd.s32 %s72, 1
      %p76 = scmp.eq.s32.totalorder %s17, 1
      %p77 = scmp.ne.s32.totalorder %s72, %s74
      %p78 = scmp.eq.s32.totalorder %s17, 0
      %p79 = por %p77, %p78
      %p80 = scmp.ne.s32.totalorder %s72, %s74
      %p81 = scmp.eq.s32.totalorder %s22, 1
      %p82 = por %p80, %p81
      %p83 = scmp.ne.s32.totalorder %s74, %s75
      %p84 = scmp.eq.s32.totalorder %s22, 0
      %p85 = por %p83, %p84
      %p86 = scmp.ne.s32.totalorder %s74, %s75
      %p87 = scmp.eq.s32.totalorder %s23, 1
      %p88 = por %p86, %p87
      %p90 = scmp.ne.s32.totalorder %s75, %s89
      %p91 = scmp.eq.s32.totalorder %s23, 0
      %p92 = por %p90, %p91
      %s94 = sadd.s32 %s93, 1
      %p97 = scmp.eq.s32.totalorder %s17, 1
      %p98 = scmp.ne.s32.totalorder %s93, %s95
      %p99 = scmp.eq.s32.totalorder %s17, 0
      %p100 = por %p98, %p99
      %p101 = scmp.ne.s32.totalorder %s93, %s95
      %p102 = scmp.eq.s32.totalorder %s22, 1
      %p103 = por %p101, %p102
      %p104 = scmp.ne.s32.totalorder %s95, %s96
      %p105 = scmp.eq.s32.totalorder %s22, 0
      %p106 = por %p104, %p105
      %p107 = scmp.ne.s32.totalorder %s95, %s96
      %p108 = scmp.eq.s32.totalorder %s23, 1
      %p109 = por %p107, %p108
      %p111 = scmp.ne.s32.totalorder %s96, %s110
      %p112 = scmp.eq.s32.totalorder %s23, 0
      %p113 = por %p111, %p112
      %s115 = sadd.s32 %s114, 1
      %p118 = scmp.eq.s32.totalorder %s17, 1
      %p119 = scmp.ne.s32.totalorder %s114, %s116
      %p120 = scmp.eq.s32.totalorder %s17, 0
      %p121 = por %p119, %p120
      %p122 = scmp.ne.s32.totalorder %s114, %s116
      %p123 = scmp.eq.s32.totalorder %s22, 1
      %p124 = por %p122, %p123
      %p125 = scmp.ne.s32.totalorder %s116, %s117
      %p126 = scmp.eq.s32.totalorder %s22, 0
      %p127 = por %p125, %p126
      %p128 = scmp.ne.s32.totalorder %s116, %s117
      %p129 = scmp.eq.s32.totalorder %s23, 1
      %p130 = por %p128, %p129
      %p132 = scmp.ne.s32.totalorder %s117, %s131
      %p133 = scmp.eq.s32.totalorder %s23, 0
      %p134 = por %p132, %p133
      %p135 = scmp.le.s32.totalorder 1, %s17
      %p136 = scmp.lt.s32.totalorder %s17, 3
      %p137 = pnand %p135, %p136
      %p138 = pneg %p137
      // Predicated region
      $region9: #{tpu_custom_call.1} parent=5 // pred_check
        _
      $region10: #{tpu_custom_call.1} parent=5 // pred_check_branch
        %140 = sbr.rel (%p137) target = $region12
      $region11: #{tpu_custom_call.1} parent=5 // pred_region
        %s141 = ssub.s32 %s17, 1
        // Predicated region
        $region13: #{tpu_custom_call.1} parent=11 // pred_check
          %p142 = pneg %p64
        $region14: #{tpu_custom_call.1} parent=11 // pred_check_branch
          %144 = sbr.rel (%p142) target = $region16
        $region15: #{tpu_custom_call.1} parent=11 // pred_region
          %146 = vsyncadd [#allocation6], 0
          %s147 = sshll.u32 %s1, 4
          %s148 = int_to_ptr.hbm [resolvable:$true] %s147
          %s149 = sshll.u32 [#allocation5], 4
          %s150 = int_to_ptr.vmem [resolvable:$true] %s149
          %155 = dma.hbm_to_vmem [thread:$0]  %s148, 192, %s150, [#allocation6], 64, 64, 4
        $region16: #{tpu_custom_call.1} parent=11 // pred_fallthru
          _
        // Predicated region
        $region17: #{tpu_custom_call.1} parent=11 // pred_check
          %p156 = pneg %p85
        $region18: #{tpu_custom_call.1} parent=11 // pred_check_branch
          %158 = sbr.rel (%p156) target = $region20
        $region19: #{tpu_custom_call.1} parent=11 // pred_region
          _
        $region20: #{tpu_custom_call.1} parent=11 // pred_fallthru
          _
      $region12: #{tpu_custom_call.1} parent=5 // pred_fallthru
        _
      %p159 = scmp.lt.s32.totalorder %s17, 2
      // Predicated region
      $region21: #{tpu_custom_call.1} parent=5 // pred_check
        %p160 = pneg %p159
      $region22: #{tpu_custom_call.1} parent=5 // pred_check_branch
        %162 = sbr.rel (%p160) target = $region24
      $region23: #{tpu_custom_call.1} parent=5 // pred_region
        // Predicated region
        $region25: #{tpu_custom_call.1} parent=23 // pred_check
          %p163 = pneg %p37
        $region26: #{tpu_custom_call.1} parent=23 // pred_check_branch
          %165 = sbr.rel (%p163) target = $region28
        $region27: #{tpu_custom_call.1} parent=23 // pred_region
          %s166 = sand.u32 %s27, 1
          %s167 = scalar_lea.sflag [#allocation3], %s166
          %s168 = sand.u32 %s27, 1
          %s169 = smul.addr %s168, 8
          %s170 = scalar_lea.vmem [#allocation2], %s169
          %172 = vsyncadd %s167, 0
          %s173 = smul.addr %s17, 8
          %s174 = scalar_lea.hbm %s0, %s173
          %s176 = sshll.u32 %s174, 4
          %s177 = int_to_ptr.hbm [resolvable:$true] %s176
          %s178 = sshll.u32 %s170, 4
          %s179 = int_to_ptr.vmem [resolvable:$true] %s178
          %181 = dma.hbm_to_vmem [thread:$0]  %s177, 128, %s179, %s167
        $region28: #{tpu_custom_call.1} parent=23 // pred_fallthru
          _
      $region24: #{tpu_custom_call.1} parent=5 // pred_fallthru
        _
      %p182 = scmp.le.s32.totalorder 1, %s17
      %p183 = scmp.lt.s32.totalorder %s17, 3
      %p184 = pnand %p182, %p183
      %p185 = pneg %p184
      // Predicated region
      $region29: #{tpu_custom_call.1} parent=5 // pred_check
        _
      $region30: #{tpu_custom_call.1} parent=5 // pred_check_branch
        %187 = sbr.rel (%p184) target = $region32
      $region31: #{tpu_custom_call.1} parent=5 // pred_region
        %s188 = ssub.s32 %s17, 1
        %s189 = sand.u32 %s30, 1
        %s190 = scalar_lea.sflag [#allocation3], %s189
        %s191 = sand.u32 %s30, 1
        %s192 = smul.addr %s191, 8
        %s193 = scalar_lea.vmem [#allocation2], %s192
        // Predicated region
        $region33: #{tpu_custom_call.1} parent=31 // pred_check
          %p194 = pneg %p43
        $region34: #{tpu_custom_call.1} parent=31 // pred_check_branch
          %196 = sbr.rel (%p194) target = $region36
        $region35: #{tpu_custom_call.1} parent=31 // pred_region
          %198 = dma.done %s190, 128
        $region36: #{tpu_custom_call.1} parent=31 // pred_fallthru
          _
        // Predicated region
        $region37: #{tpu_custom_call.1} parent=31 // pred_check
          %p199 = pneg %p64
        $region38: #{tpu_custom_call.1} parent=31 // pred_check_branch
          %201 = sbr.rel (%p199) target = $region40
        $region39: #{tpu_custom_call.1} parent=31 // pred_region
          %203 = dma.done [#allocation6], 192
        $region40: #{tpu_custom_call.1} parent=31 // pred_fallthru
          _
        %s204 = sand.u32 %s30, 1
        %s205 = scalar_lea.sflag [#allocation3], %s204
        %s206 = sand.u32 %s30, 1
        %s207 = smul.addr %s206, 8
        %s208 = scalar_lea.vmem [#allocation2], %s207
        %p209 = pneg %p43
        %p210 = pneg %p40
        %p211 = pneg %p64
        %p212 = pneg %p61
        %p213 = pneg %p85
        %p214 = pneg %p82
        %p215 = pneg %p106
        %p216 = pneg %p103
        %p217 = pneg %p127
        %p218 = pneg %p124
        %v220 = vld [vmem:[%s193] sm:$0xff]
        %221 = vxpose.xlu0.b32.start [1/16] %v220, 128
        %222 = vxpose.xlu0.b32.cont [2/16] 0.0, 128
        %223 = vxpose.xlu0.b32.cont [3/16] 0.0, 128
        %224 = vxpose.xlu0.b32.cont [4/16] 0.0, 128
        %225 = vxpose.xlu0.b32.cont [5/16] 0.0, 128
        %226 = vxpose.xlu0.b32.cont [6/16] 0.0, 128
        %227 = vxpose.xlu0.b32.cont [7/16] 0.0, 128
        %228 = vxpose.xlu0.b32.cont [8/16] 0.0, 128
        %229 = vxpose.xlu0.b32.cont [9/16] 0.0, 128
        %230 = vxpose.xlu0.b32.cont [10/16] 0.0, 128
        %231 = vxpose.xlu0.b32.cont [11/16] 0.0, 128
        %232 = vxpose.xlu0.b32.cont [12/16] 0.0, 128
        %233 = vxpose.xlu0.b32.cont [13/16] 0.0, 128
        %234 = vxpose.xlu0.b32.cont [14/16] 0.0, 128
        %235 = vxpose.xlu0.b32.cont [15/16] 0.0, 128
        %236 = vxpose.xlu0.b32.end [16/16] 0.0, 128
        %v237 = vpop.trf.xlu0
        %v238 = vpop.trf.xlu0
        %v239 = vpop.trf.xlu0
        %v240 = vpop.trf.xlu0
        %v241 = vpop.trf.xlu0
        %v242 = vpop.trf.xlu0
        %v243 = vpop.trf.xlu0
        %v244 = vpop.trf.xlu0
        %v245 = vpop.trf.xlu0
        %v246 = vpop.trf.xlu0
        %v247 = vpop.trf.xlu0
        %v248 = vpop.trf.xlu0
        %v249 = vpop.trf.xlu0
        %v250 = vpop.trf.xlu0
        %v251 = vpop.trf.xlu0
        %v252 = vpop.trf.xlu0
        %v253 = vpack.c.bf16 %v238, %v237
        %v254 = vld [vmem:[#allocation5] sm:$0xf]
        %v255 = vpack.c.bf16 %v239, %v239
        %s256 = scalar_lea.vmem [#allocation5], 4
        %v257 = vld [vmem:[%s256] sm:$0xf]
        %vm258 = vsmask.f32 7424
        %v260 = vshrl.u32 %v253, 16
        %v262 = vshll.u32 %v253, 16
        %v264 = vrot.slane %v262, 1
        %v265 = vor.u32 %v260, %v264
        %v267 = vshll.u32 %v255, 16
        %v269 = vrot.slane %v267, 1
        %v270 = vsel %vm258, %v265, %v269
        %vm271 = vcmask 64512
        %v273 = vsel %vm271, %v270, 0
        %vm275 = vcmask 1043456
        %v277 = vsel %vm275, %v257, 0
        %279 = vmatpush.bf16.msra.mxu0 0
        %280 = vmatpush.bf16.msra.mxu0 0
        %281 = vmatpush.bf16.msra.mxu0 0
        %282 = vmatpush.bf16.msra.mxu0 0
        %283 = vmatpush.bf16.msra.mxu0 0
        %284 = vmatpush.bf16.msra.mxu0 0
        %285 = vmatpush.bf16.msra.mxu0 0
        %286 = vmatpush.bf16.msra.mxu0 %v277
        %287 = vmatmul.bf16.gmra.mxu0 %v273
        %v288 = vpop.f32.mrf.mxu0
        %v289 = vadd.f32 0.0, %v288
        %v290 = vpop.f32.mrf.mxu0
        %v291 = vadd.f32 0.0, %v290
        %292 = vdwg.mxu0
        %v293 = vsel %vm271, %v253, 0
        %v296 = vsel %vm275, %v254, 0
        %298 = vmatpush.bf16.msra.mxu0 0
        %299 = vmatpush.bf16.msra.mxu0 0
        %300 = vmatpush.bf16.msra.mxu0 0
        %301 = vmatpush.bf16.msra.mxu0 0
        %302 = vmatpush.bf16.msra.mxu0 0
        %303 = vmatpush.bf16.msra.mxu0 0
        %304 = vmatpush.bf16.msra.mxu0 0
        %305 = vmatpush.bf16.msra.mxu0 %v296
        %306 = vmatmul.bf16.gmra.mxu0 %v293
        %v307 = vpop.f32.mrf.mxu0
        %v308 = vadd.f32 %v289, %v307
        %v309 = vpop.f32.mrf.mxu0
        %v310 = vadd.f32 %v291, %v309
        %311 = vdwg.mxu0
        %s312 = scalar_lea.vmem [#allocation5], 8
        %v313 = vld [vmem:[%s312] sm:$0xf]
        %vm316 = vcmask 1046528
        %v317 = vrot.slane %v253, 1
        %v318 = vrot.slane %v255, 1
        %v319 = vsel %vm316, %v317, %v318
        %v321 = vsel %vm271, %v319, 0
        %v324 = vsel %vm275, %v313, 0
        %326 = vmatpush.bf16.msra.mxu0 0
        %327 = vmatpush.bf16.msra.mxu0 0
        %328 = vmatpush.bf16.msra.mxu0 0
        %329 = vmatpush.bf16.msra.mxu0 0
        %330 = vmatpush.bf16.msra.mxu0 0
        %331 = vmatpush.bf16.msra.mxu0 0
        %332 = vmatpush.bf16.msra.mxu0 0
        %333 = vmatpush.bf16.msra.mxu0 %v324
        %334 = vmatmul.bf16.gmra.mxu0 %v321
        %v335 = vpop.f32.mrf.mxu0
        %v336 = vadd.f32 0.0, %v335
        %v337 = vpop.f32.mrf.mxu0
        %v338 = vadd.f32 0.0, %v337
        %339 = vdwg.mxu0
        %v340 = vadd.f32 %v308, %v336
        %v341 = vadd.f32 %v310, %v338
        %v342 = vld [vmem:[%s2] sm:$0x1]
        %v344 = vperm.slane %v342, 0
        %v346 = vadd.f32 %v340, %v344
        %v347 = vadd.f32 %v341, %v344
        %v348 = vmax.f32 %v346, 0.0
        %v349 = vmax.f32 %v347, 0.0
        %p350 = scmp.eq.s32.totalorder %s22, 0
        // Predicated region
        $region41: #{tpu_custom_call.1} parent=31 // pred_check
          %p351 = pneg %p350
        $region42: #{tpu_custom_call.1} parent=31 // pred_check_branch
          %353 = sbr.rel (%p351) target = $region44
        $region43: #{tpu_custom_call.1} parent=31 // pred_region
          %354 = vst [vmem:[#allocation7] sm:$0x1] 0.0
          %355 = vst [vmem:[#allocation8] sm:$0x1] 0.0
        $region44: #{tpu_custom_call.1} parent=31 // pred_fallthru
          _
        %v356 = vld [vmem:[#allocation7] sm:$0x1]
        %v357 = vadd.f32 %v348, %v349
        %v358 = vrot.slane %v357, 4
        %v359 = vadd.f32 %v357, %v358
        %v360 = vrot.slane %v359, 2
        %v361 = vadd.f32 %v359, %v360
        %v362 = vrot.slane %v361, 1
        %v363 = vadd.f32 %v361, %v362
        %v364 = vadd.f32 %v356, %v363
        %365 = vst [vmem:[#allocation7] sm:$0x1] %v364
        %v366 = vld [vmem:[#allocation8] sm:$0x1]
        %v367 = vmul.f32 %v348, %v348
        %v368 = vmul.f32 %v349, %v349
        %v369 = vadd.f32 %v367, %v368
        %v370 = vrot.slane %v369, 4
        %v371 = vadd.f32 %v369, %v370
        %v372 = vrot.slane %v371, 2
        %v373 = vadd.f32 %v371, %v372
        %v374 = vrot.slane %v373, 1
        %v375 = vadd.f32 %v373, %v374
        %v376 = vadd.f32 %v366, %v375
        %377 = vst [vmem:[#allocation8] sm:$0x1] %v376
        // Predicated region
        $region45: #{tpu_custom_call.1} parent=31 // pred_check
          %p378 = pneg %p103
        $region46: #{tpu_custom_call.1} parent=31 // pred_check_branch
          %380 = sbr.rel (%p378) target = $region48
        $region47: #{tpu_custom_call.1} parent=31 // pred_region
          %382 = vsyncadd [#allocation4], 0
          %s384 = sshll.u32 [#allocation7], 4
          %s385 = int_to_ptr.vmem [resolvable:$true] %s384
          %s386 = sshll.u32 %s3, 4
          %s387 = int_to_ptr.hbm [resolvable:$true] %s386
          %389 = dma.vmem_to_hbm [thread:$0]  %s385, 16, %s387, [#allocation4]
        $region48: #{tpu_custom_call.1} parent=31 // pred_fallthru
          _
        // Predicated region
        $region49: #{tpu_custom_call.1} parent=31 // pred_check
          %p390 = pneg %p124
        $region50: #{tpu_custom_call.1} parent=31 // pred_check_branch
          %392 = sbr.rel (%p390) target = $region52
        $region51: #{tpu_custom_call.1} parent=31 // pred_region
          %394 = vsyncadd [#allocation9], 0
          %s396 = sshll.u32 [#allocation8], 4
          %s397 = int_to_ptr.vmem [resolvable:$true] %s396
          %s398 = sshll.u32 %s4, 4
          %s399 = int_to_ptr.hbm [resolvable:$true] %s398
          %401 = dma.vmem_to_hbm [thread:$0]  %s397, 16, %s399, [#allocation9]
        $region52: #{tpu_custom_call.1} parent=31 // pred_fallthru
          _
        // Predicated region
        $region53: #{tpu_custom_call.1} parent=31 // pred_check
          %p402 = pneg %p103
        $region54: #{tpu_custom_call.1} parent=31 // pred_check_branch
          %404 = sbr.rel (%p402) target = $region56
        $region55: #{tpu_custom_call.1} parent=31 // pred_region
          %406 = dma.done [#allocation4], 16
        $region56: #{tpu_custom_call.1} parent=31 // pred_fallthru
          _
        // Predicated region
        $region57: #{tpu_custom_call.1} parent=31 // pred_check
          %p407 = pneg %p124
        $region58: #{tpu_custom_call.1} parent=31 // pred_check_branch
          %409 = sbr.rel (%p407) target = $region60
        $region59: #{tpu_custom_call.1} parent=31 // pred_region
          %411 = dma.done [#allocation9], 16
        $region60: #{tpu_custom_call.1} parent=31 // pred_fallthru
          _
      $region32: #{tpu_custom_call.1} parent=5 // pred_fallthru
        _
      %p412 = scmp.le.s32.totalorder 2, %s17
      // Predicated region
      $region61: #{tpu_custom_call.1} parent=5 // pred_check
        %p413 = pneg %p412
      $region62: #{tpu_custom_call.1} parent=5 // pred_check_branch
        %415 = sbr.rel (%p413) target = $region64
      $region63: #{tpu_custom_call.1} parent=5 // pred_region
        %s416 = ssub.s32 %s17, 2
      $region64: #{tpu_custom_call.1} parent=5 // pred_fallthru
        _
    $region6: #{tpu_custom_call.1} parent=1 // loop_footer
      %s21 = sadd.s32 1, %s17
    $region7: #{tpu_custom_call.1} parent=1 // loop_footer_branch
      %16 = sbr.rel target = $region3
    $region8: #{tpu_custom_call.1} parent=1 // loop_exit
      _
    %417 = vsyncpa [#allocation3], 1
    %s418 = scalar_lea.sflag [#allocation3], 1
    %419 = vsyncpa %s418, 1
    %420 = vsyncpa [#allocation6], 1
    %421 = vsyncpa [#allocation4], 1
    %s422 = scalar_lea.sflag [#allocation4], 1
    %423 = vsyncpa %s422, 1
    %424 = vsyncpa [#allocation9], 1

</llo_original>
